<compile_context>
chip_gen: v7x
topology: tpu7x:2x2x1
jax: 0.10.0
libtpu: 0.0.40
codegen_flags: <defaults>
</compile_context>

<pallas_src>
import functools

import jax
import jax.numpy as jnp
from jax.experimental import pallas as pl
from jax.experimental.pallas import tpu as pltpu


def _round_up(x, m):
    return (x + m - 1) // m * m


# ------------------------------ Pallas kernel ------------------------------
def _focal_loss_kernel(*refs, n_rows, tile_rows, tiles_per_chunk, gamma,
                       has_alpha):
    if has_alpha:
        logits_ref, tgt_ref, alpha_ref, fout_ref, aout_ref = refs
    else:
        logits_ref, tgt_ref, fout_ref = refs
        alpha_ref = aout_ref = None

    ci = pl.program_id(0)          # chunk axis ("parallel" -> megacore on v7x)
    ti = pl.program_id(1)          # tile-within-chunk ("arbitrary" reduction)

    @pl.when(ti == 0)
    def _init():
        fout_ref[...] = jnp.zeros_like(fout_ref)
        if has_alpha:
            aout_ref[...] = jnp.zeros_like(aout_ref)

    x = logits_ref[...].astype(jnp.float32)                  # (TR, C)
    tgt = tgt_ref[...]                                       # (TR, 1) int32

    lane = jax.lax.broadcasted_iota(jnp.int32, x.shape, 1)   # (TR, C)
    onehot = lane == tgt                                     # (TR, C)

    # per-row cross entropy in log-sum-exp form (no divisions anywhere)
    m = jnp.max(x, axis=1, keepdims=True)                    # (TR, 1)
    z = jnp.sum(jnp.exp(x - m), axis=1, keepdims=True)       # (TR, 1)
    lse = m + jnp.log(z)
    tgt_logit = jnp.sum(jnp.where(onehot, x, 0.0), axis=1, keepdims=True)
    ce = lse - tgt_logit                                     # (TR, 1)

    pt = jnp.exp(-ce)
    omp = jnp.maximum(1.0 - pt, 0.0)    # clamp: fp rounding can give ce < 0
    if float(gamma).is_integer() and gamma >= 0:
        w = jnp.ones_like(omp)
        for _ in range(int(gamma)):                          # VPU multiplies
            w = w * omp
    else:
        w = jnp.power(omp, jnp.float32(gamma))
    fl = w * ce                                              # (TR, 1)

    # Row-validity mask: handles the ragged last tile and the (possibly)
    # duplicated padding tile when n_tiles is odd and split across 2 chunks.
    gtile = ci * tiles_per_chunk + ti
    row = gtile * tile_rows + jax.lax.broadcasted_iota(
        jnp.int32, (tile_rows, 1), 0)
    valid = row < n_rows

    # Accumulate straight into the resident per-chunk output block (plain VPU
    # add, no per-step cross-sublane reduce, no per-step scalar store).
    fout_ref[...] += jnp.where(valid, fl, 0.0)

    if has_alpha:
        a = alpha_ref[...].astype(jnp.float32)               # (1, C) resident
        a_t = jnp.sum(jnp.where(onehot, a, 0.0), axis=1, keepdims=True)
        aout_ref[...] += jnp.where(valid, a_t, 0.0)


# --------------------------------- wrapper ----------------------------------
def focal_loss(logits, targets, *, alpha=None, gamma=2.0, reduction="mean",
               tile_rows=None):
    """Focal loss forward, computed inside one Pallas TPU kernel."""
    if reduction not in ("mean", "sum"):
        # TODO(synk): reduction='none' not implemented.
        raise NotImplementedError("reduction must be 'mean' or 'sum'")

    n, c = logits.shape
    itemsize = jnp.dtype(logits.dtype).itemsize

    if tile_rows is None:
        # ~2 MiB logits block: amortizes per-step overhead, fits double-buffered
        # in every generation's scoped-VMEM default.
        target_bytes = 2 * 1024 * 1024
        raw = target_bytes // max(c * itemsize, 1)
        tile_rows = max(8, (raw // 8) * 8)
    tile_rows = max(8, (int(tile_rows) // 8) * 8)
    tile_rows = min(tile_rows, _round_up(n, 8), 4096)

    n_tiles = pl.cdiv(n, tile_rows)
    # Split the batch across (up to) 2 chunks -> both TensorCores on v7x.
    n_chunks = 2 if n_tiles >= 2 else 1
    tiles_per_chunk = pl.cdiv(n_tiles, n_chunks)

    tgt = jnp.asarray(targets, jnp.int32).reshape(n, 1)

    def row_map(ci, ti):
        # Clamp: when n_tiles is odd, the trailing padded tile of the last chunk
        # re-reads the last real tile; its rows are masked out in-kernel.
        return (jnp.minimum(ci * tiles_per_chunk + ti, n_tiles - 1), 0)

    has_alpha = alpha is not None
    args = [logits, tgt]
    in_specs = [
        pl.BlockSpec((tile_rows, c), row_map),     # full-C block: no class pad
        pl.BlockSpec((tile_rows, 1), row_map),
    ]
    if has_alpha:
        a = jnp.asarray(alpha, jnp.float32).reshape(1, c)
        args.append(a)
        in_specs.append(pl.BlockSpec((1, c), lambda ci, ti: (0, 0)))  # resident

    part_struct = jax.ShapeDtypeStruct((n_chunks * tile_rows, 1), jnp.float32)
    part_spec = pl.BlockSpec((tile_rows, 1), lambda ci, ti: (ci, 0))
    if has_alpha:
        out_shape = (part_struct, part_struct)
        out_specs = [part_spec, part_spec]
    else:
        out_shape = part_struct
        out_specs = part_spec

    kern = functools.partial(
        _focal_loss_kernel, n_rows=n, tile_rows=tile_rows,
        tiles_per_chunk=tiles_per_chunk, gamma=float(gamma),
        has_alpha=has_alpha)

    result = pl.pallas_call(
        kern,
        out_shape=out_shape,
        grid_spec=pltpu.PrefetchScalarGridSpec(
            num_scalar_prefetch=0,
            grid=(n_chunks, tiles_per_chunk),
            in_specs=in_specs,
            out_specs=out_specs,
        ),
        compiler_params=pltpu.CompilerParams(
            dimension_semantics=("parallel", "arbitrary")),
    )(*args)

    scale = (1.0 / n) if reduction == "mean" else 1.0
    if has_alpha:
        fparts, aparts = result
        # torch broadcast (N,1)*(N,) -> (N,N); its mean/sum factorizes into
        # reduce(alpha_t) * reduce(focal), each carrying the same `scale`.
        return (jnp.sum(fparts) * scale) * (jnp.sum(aparts) * scale)
    return jnp.sum(result) * scale


# ----------------------------- pure-JAX reference ---------------------------
def focal_loss_ref(logits, targets, *, alpha=None, gamma=2.0, reduction="mean"):
    logits = logits.astype(jnp.float32)
    logp = jax.nn.log_softmax(logits, axis=-1)
    ce = -jnp.take_along_axis(logp, targets[:, None].astype(jnp.int32),
                              axis=-1)[:, 0]
    pt = jnp.exp(-ce)
    fl = (1.0 - pt) ** gamma * ce
    if alpha is not None:
        a = alpha[targets].reshape(-1, 1)        # (N,1)
        fl = a * fl                              # (N,N), mirroring torch broadcast
    if reduction == "mean":
        return fl.mean()
    if reduction == "sum":
        return fl.sum()
    return fl


# ----------------------------------- main ------------------------------------
if __name__ == "__main__":
    key = jax.random.PRNGKey(0)
    k1, k2, k3, k4, k5, k6, k7 = jax.random.split(key, 7)

    # module-consistent inputs: logits (N, num_classes), integer class targets
    N, C = 256, 128
    logits = 2.0 * jax.random.normal(k1, (N, C), jnp.float32)
    targets = jax.random.randint(k2, (N,), 0, C)

    # default config: alpha=None, gamma=2, reduction='mean'
    loss = jax.block_until_ready(focal_loss(logits, targets))
    ref = focal_loss_ref(logits, targets)
    assert loss.shape == ()
    assert jnp.isfinite(loss)
    assert jnp.allclose(loss, ref, rtol=1e-5, atol=1e-5), (loss, ref)

    # alpha path + sum reduction (faithful to the torch (N,1)x(N,) broadcast)
    alpha = jax.random.uniform(k3, (C,), jnp.float32, 0.25, 1.0)
    loss_a = jax.block_until_ready(
        focal_loss(logits, targets, alpha=alpha, reduction="sum"))
    ref_a = focal_loss_ref(logits, targets, alpha=alpha, reduction="sum")
    assert jnp.allclose(loss_a, ref_a, rtol=1e-4, atol=1e-4), (loss_a, ref_a)

    # bf16 logits (caller-supplied narrow dtype: half the HBM bytes)
    logits_bf = logits.astype(jnp.bfloat16)
    loss_bf = jax.block_until_ready(focal_loss(logits_bf, targets))
    ref_bf = focal_loss_ref(logits_bf.astype(jnp.float32), targets)
    assert jnp.allclose(loss_bf, ref_bf, rtol=1e-4, atol=1e-5), (loss_bf, ref_bf)

    # ragged shapes (non-128 class count, row masking, float gamma)
    N2, C2 = 37, 10
    logits2 = jax.random.normal(k4, (N2, C2), jnp.float32)
    targets2 = jax.random.randint(k5, (N2,), 0, C2)
    loss2 = jax.block_until_ready(focal_loss(logits2, targets2, gamma=1.5))
    ref2 = focal_loss_ref(logits2, targets2, gamma=1.5)
    assert jnp.allclose(loss2, ref2, rtol=1e-4, atol=1e-5), (loss2, ref2)

    # multi-tile + two-chunk + odd-tile-count path (forced small tile_rows):
    # 400 rows / 64-row tiles -> 7 tiles -> 2 chunks of 4 (one clamped dup tile)
    N3, C3 = 400, 48
    logits3 = jax.random.normal(k6, (N3, C3), jnp.float32)
    targets3 = jax.random.randint(k7, (N3,), 0, C3)
    alpha3 = jnp.linspace(0.25, 1.0, C3, dtype=jnp.float32)
    loss3 = jax.block_until_ready(
        focal_loss(logits3, targets3, alpha=alpha3, tile_rows=64))
    ref3 = focal_loss_ref(logits3, targets3, alpha=alpha3)
    assert jnp.allclose(loss3, ref3, rtol=1e-4, atol=1e-6), (loss3, ref3)

    print("KERNEL_OK")
</pallas_src>

<mosaic_0001>
module attributes {stable_mosaic.version = 11 : i64} {
  func.func @_focal_loss_kernel(%arg0: i32, %arg1: i32, %arg2: memref<256x128xf32, #tpu.memory_space<vmem>>, %arg3: memref<256x1xi32, #tpu.memory_space<vmem>>, %arg4: memref<256x1xf32, #tpu.memory_space<vmem>>) attributes {dimension_semantics = [#tpu.dimension_semantics<parallel>, #tpu.dimension_semantics<arbitrary>], iteration_bounds = array<i64: 1, 1>, scalar_prefetch = 0 : i64, scratch_operands = 0 : i64, tpu.core_type = #tpu.core_type<tc>, window_params = [{transform_indices = @transform_0, window_bounds = array<i64: 256, 128>}, {transform_indices = @transform_1, window_bounds = array<i64: 256, 1>}, {transform_indices = @transform_2, window_bounds = array<i64: 256, 1>}]} {
    %c0_i32 = arith.constant 0 : i32
    %0 = arith.cmpi eq, %arg1, %c0_i32 : i32
    %1 = arith.extui %0 : i1 to i32
    %c0_i32_0 = arith.constant 0 : i32
    %2 = arith.cmpi ne, %1, %c0_i32_0 : i32
    scf.if %2 {
      %cst_17 = arith.constant 0.000000e+00 : f32
      %46 = vector.broadcast %cst_17 : f32 to vector<256x1xf32>
      %c0_18 = arith.constant 0 : index
      %c0_19 = arith.constant 0 : index
      %47 = vector.load %arg4[%c0_18, %c0_19] : memref<256x1xf32, #tpu.memory_space<vmem>>, vector<256x1xf32>
      tpu.vector_store %arg4[%c0_18, %c0_19], %46 {strides = array<i32>} : memref<256x1xf32, #tpu.memory_space<vmem>>, vector<256x1xf32>,
    } else {
    }
    %c0 = arith.constant 0 : index
    %c0_1 = arith.constant 0 : index
    %3 = vector.load %arg2[%c0, %c0_1] : memref<256x128xf32, #tpu.memory_space<vmem>>, vector<256x128xf32>
    %c0_2 = arith.constant 0 : index
    %c0_3 = arith.constant 0 : index
    %4 = vector.load %arg3[%c0_2, %c0_3] : memref<256x1xi32, #tpu.memory_space<vmem>>, vector<256x1xi32>
    %5 = tpu.iota {dimensions = array<i32: 1>} : vector<256x128xi32>
    %6 = vector.broadcast %4 : vector<256x1xi32> to vector<256x128xi32>
    %7 = arith.cmpi eq, %5, %6 : vector<256x128xi32>
    %cst = arith.constant dense<0xFF800000> : vector<256xf32>
    %8 = vector.multi_reduction <maximumf>, %3, %cst [1] : vector<256x128xf32> to vector<256xf32>
    %9 = vector.shape_cast %8 : vector<256xf32> to vector<256x1xf32>
    %10 = vector.broadcast %9 : vector<256x1xf32> to vector<256x128xf32>
    %11 = arith.subf %3, %10 : vector<256x128xf32>
    %12 = math.exp %11 : vector<256x128xf32>
    %cst_4 = arith.constant dense<0.000000e+00> : vector<256xf32>
    %13 = vector.multi_reduction <add>, %12, %cst_4 [1] : vector<256x128xf32> to vector<256xf32>
    %14 = vector.shape_cast %13 : vector<256xf32> to vector<256x1xf32>
    %15 = math.log %14 : vector<256x1xf32>
    %16 = arith.addf %9, %15 : vector<256x1xf32>
    %cst_5 = arith.constant 0.000000e+00 : f32
    %17 = vector.broadcast %cst_5 : f32 to vector<256x128xf32>
    %18 = arith.select %7, %3, %17 : vector<256x128xi1>, vector<256x128xf32>
    %cst_6 = arith.constant dense<0.000000e+00> : vector<256xf32>
    %19 = vector.multi_reduction <add>, %18, %cst_6 [1] : vector<256x128xf32> to vector<256xf32>
    %20 = vector.shape_cast %19 : vector<256xf32> to vector<256x1xf32>
    %21 = arith.subf %16, %20 : vector<256x1xf32>
    %cst_7 = arith.constant 0.000000e+00 : f32
    %22 = vector.broadcast %cst_7 : f32 to vector<256x1xf32>
    %23 = arith.subf %22, %21 : vector<256x1xf32>
    %24 = math.exp %23 : vector<256x1xf32>
    %cst_8 = arith.constant 1.000000e+00 : f32
    %25 = vector.broadcast %cst_8 : f32 to vector<256x1xf32>
    %26 = arith.subf %25, %24 : vector<256x1xf32>
    %cst_9 = arith.constant 0.000000e+00 : f32
    %27 = vector.broadcast %cst_9 : f32 to vector<256x1xf32>
    %28 = arith.maximumf %26, %27 : vector<256x1xf32>
    %cst_10 = arith.constant 1.000000e+00 : f32
    %29 = vector.broadcast %cst_10 : f32 to vector<256x1xf32>
    %30 = arith.mulf %29, %28 : vector<256x1xf32>
    %31 = arith.mulf %30, %28 : vector<256x1xf32>
    %32 = arith.mulf %31, %21 : vector<256x1xf32>
    %c1_i32 = arith.constant 1 : i32
    %33 = arith.muli %arg0, %c1_i32 : i32
    %34 = arith.addi %33, %arg1 : i32
    %c256_i32 = arith.constant 256 : i32
    %35 = arith.muli %34, %c256_i32 : i32
    %36 = tpu.iota {dimensions = array<i32: 0>} : vector<256x1xi32>
    %37 = vector.broadcast %35 : i32 to vector<256x1xi32>
    %38 = arith.addi %37, %36 : vector<256x1xi32>
    %c256_i32_11 = arith.constant 256 : i32
    %39 = vector.broadcast %c256_i32_11 : i32 to vector<256x1xi32>
    %40 = arith.cmpi slt, %38, %39 : vector<256x1xi32>
    %c0_12 = arith.constant 0 : index
    %c0_13 = arith.constant 0 : index
    %41 = vector.load %arg4[%c0_12, %c0_13] : memref<256x1xf32, #tpu.memory_space<vmem>>, vector<256x1xf32>
    %cst_14 = arith.constant 0.000000e+00 : f32
    %42 = vector.broadcast %cst_14 : f32 to vector<256x1xf32>
    %43 = arith.select %40, %32, %42 : vector<256x1xi1>, vector<256x1xf32>
    %44 = arith.addf %41, %43 : vector<256x1xf32>
    %c0_15 = arith.constant 0 : index
    %c0_16 = arith.constant 0 : index
    %45 = vector.load %arg4[%c0_15, %c0_16] : memref<256x1xf32, #tpu.memory_space<vmem>>, vector<256x1xf32>
    tpu.vector_store %arg4[%c0_15, %c0_16], %44 {strides = array<i32>} : memref<256x1xf32, #tpu.memory_space<vmem>>, vector<256x1xf32>,
    return
  }
  func.func @transform_0(%arg0: i32, %arg1: i32) -> (i32, i32) {
    %c1_i32 = arith.constant 1 : i32
    %0 = arith.muli %arg0, %c1_i32 : i32
    %1 = arith.addi %0, %arg1 : i32
    %c0_i32 = arith.constant 0 : i32
    %2 = arith.minsi %1, %c0_i32 : i32
    %c0_i32_0 = arith.constant 0 : i32
    %c0_i32_1 = arith.constant 0 : i32
    return %2, %c0_i32_0 : i32, i32
  }
  func.func @transform_1(%arg0: i32, %arg1: i32) -> (i32, i32) {
    %c1_i32 = arith.constant 1 : i32
    %0 = arith.muli %arg0, %c1_i32 : i32
    %1 = arith.addi %0, %arg1 : i32
    %c0_i32 = arith.constant 0 : i32
    %2 = arith.minsi %1, %c0_i32 : i32
    %c0_i32_0 = arith.constant 0 : i32
    %c0_i32_1 = arith.constant 0 : i32
    return %2, %c0_i32_0 : i32, i32
  }
  func.func @transform_2(%arg0: i32, %arg1: i32) -> (i32, i32) {
    %c0_i32 = arith.constant 0 : i32
    %c0_i32_0 = arith.constant 0 : i32
    return %arg0, %c0_i32 : i32, i32
  }
}

</mosaic_0001>

<llo_original>
// kernel: tpu_custom_call.1
$region0: #{tpu_custom_call.1}
  #allocation0 [shape = 'u32[]', space=smem, size = 0x4, offset = 0x4, fixed_abs, tag = 'smem constant byte address 0x4 - core index']
  #allocation1 [shape = 'u32[144,128]{1,0:T(1,128)}', space=vmem, size = 0x12000, scoped, tag = 'internal scratch']
  %s0 = inlined_call_operand.vmem [shape: f32[256,128], index: 0, kind: input, shape index: {}]
  %s1 = inlined_call_operand.vmem [shape: s32[256,1], index: 1, kind: input, shape index: {}]
  %s2 = inlined_call_operand.vmem [shape: f32[256,1], index: 2, kind: output, shape index: {}]
  %s3 = sld [smem:[#allocation0]]
  $region22: #{tpu_custom_call.1} parent=0
    _
  %s5 = ssub.s32 1, %s3
  %s6 = scalar_select 0, %s5, %s3
  // Predicated region
  $region2: #{tpu_custom_call.1} parent=0 // pred_check
    _
  $region3: #{tpu_custom_call.1} parent=0 // pred_check_branch
    %8 = sbr.rel (0) target = $region5
  $region4: #{tpu_custom_call.1} parent=0 // pred_region
    %s9 = sadd.s32 0, 0
    %p10 = scmp.lt.s32.totalorder %s9, 0
    %s11 = scalar_select %p10, %s9, 0
    %s12 = smul.u32 32, %s11
    %p13 = scmp.lt.s32.totalorder %s12, 31
    %s14 = scalar_select %p13, %s12, 31
    %s15 = smul.addr %s14, 8
    %s16 = scalar_lea.vmem %s0, %s15
    %s17 = sadd.s32 0, 0
    %p18 = scmp.lt.s32.totalorder %s17, 0
    %s19 = scalar_select %p18, %s17, 0
    %s20 = smul.u32 32, %s19
  $region5: #{tpu_custom_call.1} parent=0 // pred_fallthru
    _
  // Predicated region
  $region6: #{tpu_custom_call.1} parent=0 // pred_check
    _
  $region7: #{tpu_custom_call.1} parent=0 // pred_check_branch
    %22 = sbr.rel (0) target = $region9
  $region8: #{tpu_custom_call.1} parent=0 // pred_region
    %s23 = sadd.s32 0, 0
    %p24 = scmp.lt.s32.totalorder %s23, 0
    %s25 = scalar_select %p24, %s23, 0
    %s26 = smul.u32 32, %s25
    %p27 = scmp.lt.s32.totalorder %s26, 31
    %s28 = scalar_select %p27, %s26, 31
    %s29 = smul.addr %s28, 8
    %s30 = scalar_lea.vmem %s1, %s29
    %s31 = sadd.s32 0, 0
    %p32 = scmp.lt.s32.totalorder %s31, 0
    %s33 = scalar_select %p32, %s31, 0
    %s34 = smul.u32 32, %s33
  $region9: #{tpu_custom_call.1} parent=0 // pred_fallthru
    _
  %s35 = sadd.s32 0, 0
  %p36 = scmp.lt.s32.totalorder %s35, 0
  %s37 = scalar_select %p36, %s35, 0
  %s38 = smul.u32 32, %s37
  %p39 = scmp.lt.s32.totalorder %s38, 31
  %s40 = scalar_select %p39, %s38, 31
  %s41 = smul.addr %s40, 8
  %s42 = scalar_lea.vmem %s0, %s41
  %s43 = sadd.s32 0, 0
  %p44 = scmp.lt.s32.totalorder %s43, 0
  %s45 = scalar_select %p44, %s43, 0
  %s46 = smul.u32 32, %s45
  %p47 = scmp.lt.s32.totalorder %s46, 31
  %s48 = scalar_select %p47, %s46, 31
  %s49 = smul.addr %s48, 8
  %s50 = scalar_lea.vmem %s1, %s49
  %s51 = sadd.s32 0, 0
  %p52 = scmp.lt.s32.totalorder %s51, 0
  %s53 = scalar_select %p52, %s51, 0
  %s54 = smul.u32 32, %s53
  %p55 = scmp.lt.s32.totalorder %s54, 31
  %s56 = scalar_select %p55, %s54, 31
  %s57 = smul.addr %s56, 8
  %s58 = scalar_lea.vmem %s0, %s57
  %s59 = sadd.s32 0, 0
  %p60 = scmp.lt.s32.totalorder %s59, 0
  %s61 = scalar_select %p60, %s59, 0
  %s62 = smul.u32 32, %s61
  %s63 = sadd.s32 0, 0
  %p64 = scmp.lt.s32.totalorder %s63, 0
  %s65 = scalar_select %p64, %s63, 0
  %s66 = smul.u32 32, %s65
  %p67 = scmp.lt.s32.totalorder %s66, 31
  %s68 = scalar_select %p67, %s66, 31
  %s69 = smul.addr %s68, 8
  %s70 = scalar_lea.vmem %s1, %s69
  %s71 = sadd.s32 0, 0
  %p72 = scmp.lt.s32.totalorder %s71, 0
  %s73 = scalar_select %p72, %s71, 0
  %s74 = smul.u32 32, %s73
  %p75 = scmp.eq.s32.totalorder 0, 0
  // Predicated region
  $region10: #{tpu_custom_call.1} parent=0 // pred_check
    %p76 = pneg %p75
  $region11: #{tpu_custom_call.1} parent=0 // pred_check_branch
    %78 = sbr.rel (%p76) target = $region13
  $region12: #{tpu_custom_call.1} parent=0 // pred_region
    %vm79 = vcmask 7168
    %80 = vst.msk [vmem:[%s2] sm:$0xff] %vm79, 0.0
    %81 = vst.msk [vmem:[%s2 + $0x8] sm:$0xff] %vm79, 0.0
    %82 = vst.msk [vmem:[%s2 + $0x10] sm:$0xff] %vm79, 0.0
    %83 = vst.msk [vmem:[%s2 + $0x18] sm:$0xff] %vm79, 0.0
    %84 = vst.msk [vmem:[%s2 + $0x20] sm:$0xff] %vm79, 0.0
    %85 = vst.msk [vmem:[%s2 + $0x28] sm:$0xff] %vm79, 0.0
    %86 = vst.msk [vmem:[%s2 + $0x30] sm:$0xff] %vm79, 0.0
    %87 = vst.msk [vmem:[%s2 + $0x38] sm:$0xff] %vm79, 0.0
    %88 = vst.msk [vmem:[%s2 + $0x40] sm:$0xff] %vm79, 0.0
    %89 = vst.msk [vmem:[%s2 + $0x48] sm:$0xff] %vm79, 0.0
    %90 = vst.msk [vmem:[%s2 + $0x50] sm:$0xff] %vm79, 0.0
    %91 = vst.msk [vmem:[%s2 + $0x58] sm:$0xff] %vm79, 0.0
    %92 = vst.msk [vmem:[%s2 + $0x60] sm:$0xff] %vm79, 0.0
    %93 = vst.msk [vmem:[%s2 + $0x68] sm:$0xff] %vm79, 0.0
    %94 = vst.msk [vmem:[%s2 + $0x70] sm:$0xff] %vm79, 0.0
    %95 = vst.msk [vmem:[%s2 + $0x78] sm:$0xff] %vm79, 0.0
    %96 = vst.msk [vmem:[%s2 + $0x80] sm:$0xff] %vm79, 0.0
    %97 = vst.msk [vmem:[%s2 + $0x88] sm:$0xff] %vm79, 0.0
    %98 = vst.msk [vmem:[%s2 + $0x90] sm:$0xff] %vm79, 0.0
    %99 = vst.msk [vmem:[%s2 + $0x98] sm:$0xff] %vm79, 0.0
    %100 = vst.msk [vmem:[%s2 + $0xa0] sm:$0xff] %vm79, 0.0
    %101 = vst.msk [vmem:[%s2 + $0xa8] sm:$0xff] %vm79, 0.0
    %102 = vst.msk [vmem:[%s2 + $0xb0] sm:$0xff] %vm79, 0.0
    %103 = vst.msk [vmem:[%s2 + $0xb8] sm:$0xff] %vm79, 0.0
    %104 = vst.msk [vmem:[%s2 + $0xc0] sm:$0xff] %vm79, 0.0
    %105 = vst.msk [vmem:[%s2 + $0xc8] sm:$0xff] %vm79, 0.0
    %106 = vst.msk [vmem:[%s2 + $0xd0] sm:$0xff] %vm79, 0.0
    %107 = vst.msk [vmem:[%s2 + $0xd8] sm:$0xff] %vm79, 0.0
    %108 = vst.msk [vmem:[%s2 + $0xe0] sm:$0xff] %vm79, 0.0
    %109 = vst.msk [vmem:[%s2 + $0xe8] sm:$0xff] %vm79, 0.0
    %110 = vst.msk [vmem:[%s2 + $0xf0] sm:$0xff] %vm79, 0.0
    %111 = vst.msk [vmem:[%s2 + $0xf8] sm:$0xff] %vm79, 0.0
  $region13: #{tpu_custom_call.1} parent=0 // pred_fallthru
    _
  %v112 = vld [vmem:[%s58] sm:$0xff]
  %v113 = vld [vmem:[%s58 + $0x8] sm:$0xff]
  %v114 = vld [vmem:[%s58 + $0x10] sm:$0xff]
  %v115 = vld [vmem:[%s58 + $0x18] sm:$0xff]
  %v116 = vld [vmem:[%s58 + $0x20] sm:$0xff]
  %v117 = vld [vmem:[%s58 + $0x28] sm:$0xff]
  %v118 = vld [vmem:[%s58 + $0x30] sm:$0xff]
  %v119 = vld [vmem:[%s58 + $0x38] sm:$0xff]
  %v120 = vld [vmem:[%s58 + $0x40] sm:$0xff]
  %v121 = vld [vmem:[%s58 + $0x48] sm:$0xff]
  %v122 = vld [vmem:[%s58 + $0x50] sm:$0xff]
  %v123 = vld [vmem:[%s58 + $0x58] sm:$0xff]
  %v124 = vld [vmem:[%s58 + $0x60] sm:$0xff]
  %v125 = vld [vmem:[%s58 + $0x68] sm:$0xff]
  %v126 = vld [vmem:[%s58 + $0x70] sm:$0xff]
  %v127 = vld [vmem:[%s58 + $0x78] sm:$0xff]
  %v128 = vld [vmem:[%s58 + $0x80] sm:$0xff]
  %v129 = vld [vmem:[%s58 + $0x88] sm:$0xff]
  %v130 = vld [vmem:[%s58 + $0x90] sm:$0xff]
  %v131 = vld [vmem:[%s58 + $0x98] sm:$0xff]
  %v132 = vld [vmem:[%s58 + $0xa0] sm:$0xff]
  %v133 = vld [vmem:[%s58 + $0xa8] sm:$0xff]
  %v134 = vld [vmem:[%s58 + $0xb0] sm:$0xff]
  %v135 = vld [vmem:[%s58 + $0xb8] sm:$0xff]
  %v136 = vld [vmem:[%s58 + $0xc0] sm:$0xff]
  %v137 = vld [vmem:[%s58 + $0xc8] sm:$0xff]
  %v138 = vld [vmem:[%s58 + $0xd0] sm:$0xff]
  %v139 = vld [vmem:[%s58 + $0xd8] sm:$0xff]
  %v140 = vld [vmem:[%s58 + $0xe0] sm:$0xff]
  %v141 = vld [vmem:[%s58 + $0xe8] sm:$0xff]
  %v142 = vld [vmem:[%s58 + $0xf0] sm:$0xff]
  %v143 = vld [vmem:[%s58 + $0xf8] sm:$0xff]
  %v144 = vld [vmem:[%s70] sm:$0xff]
  %v145 = vld [vmem:[%s70 + $0x8] sm:$0xff]
  %v146 = vld [vmem:[%s70 + $0x10] sm:$0xff]
  %v147 = vld [vmem:[%s70 + $0x18] sm:$0xff]
  %v148 = vld [vmem:[%s70 + $0x20] sm:$0xff]
  %v149 = vld [vmem:[%s70 + $0x28] sm:$0xff]
  %v150 = vld [vmem:[%s70 + $0x30] sm:$0xff]
  %v151 = vld [vmem:[%s70 + $0x38] sm:$0xff]
  %v152 = vld [vmem:[%s70 + $0x40] sm:$0xff]
  %v153 = vld [vmem:[%s70 + $0x48] sm:$0xff]
  %v154 = vld [vmem:[%s70 + $0x50] sm:$0xff]
  %v155 = vld [vmem:[%s70 + $0x58] sm:$0xff]
  %v156 = vld [vmem:[%s70 + $0x60] sm:$0xff]
  %v157 = vld [vmem:[%s70 + $0x68] sm:$0xff]
  %v158 = vld [vmem:[%s70 + $0x70] sm:$0xff]
  %v159 = vld [vmem:[%s70 + $0x78] sm:$0xff]
  %v160 = vld [vmem:[%s70 + $0x80] sm:$0xff]
  %v161 = vld [vmem:[%s70 + $0x88] sm:$0xff]
  %v162 = vld [vmem:[%s70 + $0x90] sm:$0xff]
  %v163 = vld [vmem:[%s70 + $0x98] sm:$0xff]
  %v164 = vld [vmem:[%s70 + $0xa0] sm:$0xff]
  %v165 = vld [vmem:[%s70 + $0xa8] sm:$0xff]
  %v166 = vld [vmem:[%s70 + $0xb0] sm:$0xff]
  %v167 = vld [vmem:[%s70 + $0xb8] sm:$0xff]
  %v168 = vld [vmem:[%s70 + $0xc0] sm:$0xff]
  %v169 = vld [vmem:[%s70 + $0xc8] sm:$0xff]
  %v170 = vld [vmem:[%s70 + $0xd0] sm:$0xff]
  %v171 = vld [vmem:[%s70 + $0xd8] sm:$0xff]
  %v172 = vld [vmem:[%s70 + $0xe0] sm:$0xff]
  %v173 = vld [vmem:[%s70 + $0xe8] sm:$0xff]
  %v174 = vld [vmem:[%s70 + $0xf0] sm:$0xff]
  %v175 = vld [vmem:[%s70 + $0xf8] sm:$0xff]
  %v176 = vlaneseq
  %v177 = vand.u32 %v176, 127
  %178 = vset.pattern.permute.xlu0 0
  %179 = vperm.xlu0 %178, %v144
  %v180 = vpop.permute.xlu0 %179
  %181 = vset.pattern.permute.xlu0 0
  %182 = vperm.xlu0 %181, %v145
  %v183 = vpop.permute.xlu0 %182
  %184 = vset.pattern.permute.xlu0 0
  %185 = vperm.xlu0 %184, %v146
  %v186 = vpop.permute.xlu0 %185
  %187 = vset.pattern.permute.xlu0 0
  %188 = vperm.xlu0 %187, %v147
  %v189 = vpop.permute.xlu0 %188
  %190 = vset.pattern.permute.xlu0 0
  %191 = vperm.xlu0 %190, %v148
  %v192 = vpop.permute.xlu0 %191
  %193 = vset.pattern.permute.xlu0 0
  %194 = vperm.xlu0 %193, %v149
  %v195 = vpop.permute.xlu0 %194
  %196 = vset.pattern.permute.xlu0 0
  %197 = vperm.xlu0 %196, %v150
  %v198 = vpop.permute.xlu0 %197
  %199 = vset.pattern.permute.xlu0 0
  %200 = vperm.xlu0 %199, %v151
  %v201 = vpop.permute.xlu0 %200
  %202 = vset.pattern.permute.xlu0 0
  %203 = vperm.xlu0 %202, %v152
  %v204 = vpop.permute.xlu0 %203
  %205 = vset.pattern.permute.xlu0 0
  %206 = vperm.xlu0 %205, %v153
  %v207 = vpop.permute.xlu0 %206
  %208 = vset.pattern.permute.xlu0 0
  %209 = vperm.xlu0 %208, %v154
  %v210 = vpop.permute.xlu0 %209
  %211 = vset.pattern.permute.xlu0 0
  %212 = vperm.xlu0 %211, %v155
  %v213 = vpop.permute.xlu0 %212
  %214 = vset.pattern.permute.xlu0 0
  %215 = vperm.xlu0 %214, %v156
  %v216 = vpop.permute.xlu0 %215
  %217 = vset.pattern.permute.xlu0 0
  %218 = vperm.xlu0 %217, %v157
  %v219 = vpop.permute.xlu0 %218
  %220 = vset.pattern.permute.xlu0 0
  %221 = vperm.xlu0 %220, %v158
  %v222 = vpop.permute.xlu0 %221
  %223 = vset.pattern.permute.xlu0 0
  %224 = vperm.xlu0 %223, %v159
  %v225 = vpop.permute.xlu0 %224
  %226 = vset.pattern.permute.xlu0 0
  %227 = vperm.xlu0 %226, %v160
  %v228 = vpop.permute.xlu0 %227
  %229 = vset.pattern.permute.xlu0 0
  %230 = vperm.xlu0 %229, %v161
  %v231 = vpop.permute.xlu0 %230
  %232 = vset.pattern.permute.xlu0 0
  %233 = vperm.xlu0 %232, %v162
  %v234 = vpop.permute.xlu0 %233
  %235 = vset.pattern.permute.xlu0 0
  %236 = vperm.xlu0 %235, %v163
  %v237 = vpop.permute.xlu0 %236
  %238 = vset.pattern.permute.xlu0 0
  %239 = vperm.xlu0 %238, %v164
  %v240 = vpop.permute.xlu0 %239
  %241 = vset.pattern.permute.xlu0 0
  %242 = vperm.xlu0 %241, %v165
  %v243 = vpop.permute.xlu0 %242
  %244 = vset.pattern.permute.xlu0 0
  %245 = vperm.xlu0 %244, %v166
  %v246 = vpop.permute.xlu0 %245
  %247 = vset.pattern.permute.xlu0 0
  %248 = vperm.xlu0 %247, %v167
  %v249 = vpop.permute.xlu0 %248
  %250 = vset.pattern.permute.xlu0 0
  %251 = vperm.xlu0 %250, %v168
  %v252 = vpop.permute.xlu0 %251
  %253 = vset.pattern.permute.xlu0 0
  %254 = vperm.xlu0 %253, %v169
  %v255 = vpop.permute.xlu0 %254
  %256 = vset.pattern.permute.xlu0 0
  %257 = vperm.xlu0 %256, %v170
  %v258 = vpop.permute.xlu0 %257
  %259 = vset.pattern.permute.xlu0 0
  %260 = vperm.xlu0 %259, %v171
  %v261 = vpop.permute.xlu0 %260
  %262 = vset.pattern.permute.xlu0 0
  %263 = vperm.xlu0 %262, %v172
  %v264 = vpop.permute.xlu0 %263
  %265 = vset.pattern.permute.xlu0 0
  %266 = vperm.xlu0 %265, %v173
  %v267 = vpop.permute.xlu0 %266
  %268 = vset.pattern.permute.xlu0 0
  %269 = vperm.xlu0 %268, %v174
  %v270 = vpop.permute.xlu0 %269
  %271 = vset.pattern.permute.xlu0 0
  %272 = vperm.xlu0 %271, %v175
  %v273 = vpop.permute.xlu0 %272
  %vm274 = vcmp.eq.s32.totalorder %v177, %v180
  %vm275 = vcmp.eq.s32.totalorder %v177, %v183
  %vm276 = vcmp.eq.s32.totalorder %v177, %v186
  %vm277 = vcmp.eq.s32.totalorder %v177, %v189
  %vm278 = vcmp.eq.s32.totalorder %v177, %v192
  %vm279 = vcmp.eq.s32.totalorder %v177, %v195
  %vm280 = vcmp.eq.s32.totalorder %v177, %v198
  %vm281 = vcmp.eq.s32.totalorder %v177, %v201
  %vm282 = vcmp.eq.s32.totalorder %v177, %v204
  %vm283 = vcmp.eq.s32.totalorder %v177, %v207
  %vm284 = vcmp.eq.s32.totalorder %v177, %v210
  %vm285 = vcmp.eq.s32.totalorder %v177, %v213
  %vm286 = vcmp.eq.s32.totalorder %v177, %v216
  %vm287 = vcmp.eq.s32.totalorder %v177, %v219
  %vm288 = vcmp.eq.s32.totalorder %v177, %v222
  %vm289 = vcmp.eq.s32.totalorder %v177, %v225
  %vm290 = vcmp.eq.s32.totalorder %v177, %v228
  %vm291 = vcmp.eq.s32.totalorder %v177, %v231
  %vm292 = vcmp.eq.s32.totalorder %v177, %v234
  %vm293 = vcmp.eq.s32.totalorder %v177, %v237
  %vm294 = vcmp.eq.s32.totalorder %v177, %v240
  %vm295 = vcmp.eq.s32.totalorder %v177, %v243
  %vm296 = vcmp.eq.s32.totalorder %v177, %v246
  %vm297 = vcmp.eq.s32.totalorder %v177, %v249
  %vm298 = vcmp.eq.s32.totalorder %v177, %v252
  %vm299 = vcmp.eq.s32.totalorder %v177, %v255
  %vm300 = vcmp.eq.s32.totalorder %v177, %v258
  %vm301 = vcmp.eq.s32.totalorder %v177, %v261
  %vm302 = vcmp.eq.s32.totalorder %v177, %v264
  %vm303 = vcmp.eq.s32.totalorder %v177, %v267
  %vm304 = vcmp.eq.s32.totalorder %v177, %v270
  %vm305 = vcmp.eq.s32.totalorder %v177, %v273
  %306 = vmax.xlane.f32.xlu0 %v112
  %v307 = vpop.xlane.xlu0 %306
  %308 = vmax.xlane.f32.xlu0 %v113
  %v309 = vpop.xlane.xlu0 %308
  %310 = vmax.xlane.f32.xlu0 %v114
  %v311 = vpop.xlane.xlu0 %310
  %312 = vmax.xlane.f32.xlu0 %v115
  %v313 = vpop.xlane.xlu0 %312
  %314 = vmax.xlane.f32.xlu0 %v116
  %v315 = vpop.xlane.xlu0 %314
  %316 = vmax.xlane.f32.xlu0 %v117
  %v317 = vpop.xlane.xlu0 %316
  %318 = vmax.xlane.f32.xlu0 %v118
  %v319 = vpop.xlane.xlu0 %318
  %320 = vmax.xlane.f32.xlu0 %v119
  %v321 = vpop.xlane.xlu0 %320
  %322 = vmax.xlane.f32.xlu0 %v120
  %v323 = vpop.xlane.xlu0 %322
  %324 = vmax.xlane.f32.xlu0 %v121
  %v325 = vpop.xlane.xlu0 %324
  %326 = vmax.xlane.f32.xlu0 %v122
  %v327 = vpop.xlane.xlu0 %326
  %328 = vmax.xlane.f32.xlu0 %v123
  %v329 = vpop.xlane.xlu0 %328
  %330 = vmax.xlane.f32.xlu0 %v124
  %v331 = vpop.xlane.xlu0 %330
  %332 = vmax.xlane.f32.xlu0 %v125
  %v333 = vpop.xlane.xlu0 %332
  %334 = vmax.xlane.f32.xlu0 %v126
  %v335 = vpop.xlane.xlu0 %334
  %336 = vmax.xlane.f32.xlu0 %v127
  %v337 = vpop.xlane.xlu0 %336
  %338 = vmax.xlane.f32.xlu0 %v128
  %v339 = vpop.xlane.xlu0 %338
  %340 = vmax.xlane.f32.xlu0 %v129
  %v341 = vpop.xlane.xlu0 %340
  %342 = vmax.xlane.f32.xlu0 %v130
  %v343 = vpop.xlane.xlu0 %342
  %344 = vmax.xlane.f32.xlu0 %v131
  %v345 = vpop.xlane.xlu0 %344
  %346 = vmax.xlane.f32.xlu0 %v132
  %v347 = vpop.xlane.xlu0 %346
  %348 = vmax.xlane.f32.xlu0 %v133
  %v349 = vpop.xlane.xlu0 %348
  %350 = vmax.xlane.f32.xlu0 %v134
  %v351 = vpop.xlane.xlu0 %350
  %352 = vmax.xlane.f32.xlu0 %v135
  %v353 = vpop.xlane.xlu0 %352
  %354 = vmax.xlane.f32.xlu0 %v136
  %v355 = vpop.xlane.xlu0 %354
  %356 = vmax.xlane.f32.xlu0 %v137
  %v357 = vpop.xlane.xlu0 %356
  %358 = vmax.xlane.f32.xlu0 %v138
  %v359 = vpop.xlane.xlu0 %358
  %360 = vmax.xlane.f32.xlu0 %v139
  %v361 = vpop.xlane.xlu0 %360
  %362 = vmax.xlane.f32.xlu0 %v140
  %v363 = vpop.xlane.xlu0 %362
  %364 = vmax.xlane.f32.xlu0 %v141
  %v365 = vpop.xlane.xlu0 %364
  %366 = vmax.xlane.f32.xlu0 %v142
  %v367 = vpop.xlane.xlu0 %366
  %368 = vmax.xlane.f32.xlu0 %v143
  %v369 = vpop.xlane.xlu0 %368
  %v370 = vsub.f32 %v112, %v307
  %v371 = vsub.f32 %v113, %v309
  %v372 = vsub.f32 %v114, %v311
  %v373 = vsub.f32 %v115, %v313
  %v374 = vsub.f32 %v116, %v315
  %v375 = vsub.f32 %v117, %v317
  %v376 = vsub.f32 %v118, %v319
  %v377 = vsub.f32 %v119, %v321
  %v378 = vsub.f32 %v120, %v323
  %v379 = vsub.f32 %v121, %v325
  %v380 = vsub.f32 %v122, %v327
  %v381 = vsub.f32 %v123, %v329
  %v382 = vsub.f32 %v124, %v331
  %v383 = vsub.f32 %v125, %v333
  %v384 = vsub.f32 %v126, %v335
  %v385 = vsub.f32 %v127, %v337
  %v386 = vsub.f32 %v128, %v339
  %v387 = vsub.f32 %v129, %v341
  %v388 = vsub.f32 %v130, %v343
  %v389 = vsub.f32 %v131, %v345
  %v390 = vsub.f32 %v132, %v347
  %v391 = vsub.f32 %v133, %v349
  %v392 = vsub.f32 %v134, %v351
  %v393 = vsub.f32 %v135, %v353
  %v394 = vsub.f32 %v136, %v355
  %v395 = vsub.f32 %v137, %v357
  %v396 = vsub.f32 %v138, %v359
  %v397 = vsub.f32 %v139, %v361
  %v398 = vsub.f32 %v140, %v363
  %v399 = vsub.f32 %v141, %v365
  %v400 = vsub.f32 %v142, %v367
  %v401 = vsub.f32 %v143, %v369
  %v402 = vmul.f32 %v370, 1.442695
  %v403 = vpow.pop %v402
  %v404 = vmul.f32 %v371, 1.442695
  %v405 = vpow.pop %v404
  %v406 = vmul.f32 %v372, 1.442695
  %v407 = vpow.pop %v406
  %v408 = vmul.f32 %v373, 1.442695
  %v409 = vpow.pop %v408
  %v410 = vmul.f32 %v374, 1.442695
  %v411 = vpow.pop %v410
  %v412 = vmul.f32 %v375, 1.442695
  %v413 = vpow.pop %v412
  %v414 = vmul.f32 %v376, 1.442695
  %v415 = vpow.pop %v414
  %v416 = vmul.f32 %v377, 1.442695
  %v417 = vpow.pop %v416
  %v418 = vmul.f32 %v378, 1.442695
  %v419 = vpow.pop %v418
  %v420 = vmul.f32 %v379, 1.442695
  %v421 = vpow.pop %v420
  %v422 = vmul.f32 %v380, 1.442695
  %v423 = vpow.pop %v422
  %v424 = vmul.f32 %v381, 1.442695
  %v425 = vpow.pop %v424
  %v426 = vmul.f32 %v382, 1.442695
  %v427 = vpow.pop %v426
  %v428 = vmul.f32 %v383, 1.442695
  %v429 = vpow.pop %v428
  %v430 = vmul.f32 %v384, 1.442695
  %v431 = vpow.pop %v430
  %v432 = vmul.f32 %v385, 1.442695
  %v433 = vpow.pop %v432
  %v434 = vmul.f32 %v386, 1.442695
  %v435 = vpow.pop %v434
  %v436 = vmul.f32 %v387, 1.442695
  %v437 = vpow.pop %v436
  %v438 = vmul.f32 %v388, 1.442695
  %v439 = vpow.pop %v438
  %v440 = vmul.f32 %v389, 1.442695
  %v441 = vpow.pop %v440
  %v442 = vmul.f32 %v390, 1.442695
  %v443 = vpow.pop %v442
  %v444 = vmul.f32 %v391, 1.442695
  %v445 = vpow.pop %v444
  %v446 = vmul.f32 %v392, 1.442695
  %v447 = vpow.pop %v446
  %v448 = vmul.f32 %v393, 1.442695
  %v449 = vpow.pop %v448
  %v450 = vmul.f32 %v394, 1.442695
  %v451 = vpow.pop %v450
  %v452 = vmul.f32 %v395, 1.442695
  %v453 = vpow.pop %v452
  %v454 = vmul.f32 %v396, 1.442695
  %v455 = vpow.pop %v454
  %v456 = vmul.f32 %v397, 1.442695
  %v457 = vpow.pop %v456
  %v458 = vmul.f32 %v398, 1.442695
  %v459 = vpow.pop %v458
  %v460 = vmul.f32 %v399, 1.442695
  %v461 = vpow.pop %v460
  %v462 = vmul.f32 %v400, 1.442695
  %v463 = vpow.pop %v462
  %v464 = vmul.f32 %v401, 1.442695
  %v465 = vpow.pop %v464
  %466 = vadd.xlane.f32.xlu0 %v403
  %v467 = vpop.xlane.xlu0 %466
  %468 = vadd.xlane.f32.xlu0 %v405
  %v469 = vpop.xlane.xlu0 %468
  %470 = vadd.xlane.f32.xlu0 %v407
  %v471 = vpop.xlane.xlu0 %470
  %472 = vadd.xlane.f32.xlu0 %v409
  %v473 = vpop.xlane.xlu0 %472
  %474 = vadd.xlane.f32.xlu0 %v411
  %v475 = vpop.xlane.xlu0 %474
  %476 = vadd.xlane.f32.xlu0 %v413
  %v477 = vpop.xlane.xlu0 %476
  %478 = vadd.xlane.f32.xlu0 %v415
  %v479 = vpop.xlane.xlu0 %478
  %480 = vadd.xlane.f32.xlu0 %v417
  %v481 = vpop.xlane.xlu0 %480
  %482 = vadd.xlane.f32.xlu0 %v419
  %v483 = vpop.xlane.xlu0 %482
  %484 = vadd.xlane.f32.xlu0 %v421
  %v485 = vpop.xlane.xlu0 %484
  %486 = vadd.xlane.f32.xlu0 %v423
  %v487 = vpop.xlane.xlu0 %486
  %488 = vadd.xlane.f32.xlu0 %v425
  %v489 = vpop.xlane.xlu0 %488
  %490 = vadd.xlane.f32.xlu0 %v427
  %v491 = vpop.xlane.xlu0 %490
  %492 = vadd.xlane.f32.xlu0 %v429
  %v493 = vpop.xlane.xlu0 %492
  %494 = vadd.xlane.f32.xlu0 %v431
  %v495 = vpop.xlane.xlu0 %494
  %496 = vadd.xlane.f32.xlu0 %v433
  %v497 = vpop.xlane.xlu0 %496
  %498 = vadd.xlane.f32.xlu0 %v435
  %v499 = vpop.xlane.xlu0 %498
  %500 = vadd.xlane.f32.xlu0 %v437
  %v501 = vpop.xlane.xlu0 %500
  %502 = vadd.xlane.f32.xlu0 %v439
  %v503 = vpop.xlane.xlu0 %502
  %504 = vadd.xlane.f32.xlu0 %v441
  %v505 = vpop.xlane.xlu0 %504
  %506 = vadd.xlane.f32.xlu0 %v443
  %v507 = vpop.xlane.xlu0 %506
  %508 = vadd.xlane.f32.xlu0 %v445
  %v509 = vpop.xlane.xlu0 %508
  %510 = vadd.xlane.f32.xlu0 %v447
  %v511 = vpop.xlane.xlu0 %510
  %512 = vadd.xlane.f32.xlu0 %v449
  %v513 = vpop.xlane.xlu0 %512
  %514 = vadd.xlane.f32.xlu0 %v451
  %v515 = vpop.xlane.xlu0 %514
  %516 = vadd.xlane.f32.xlu0 %v453
  %v517 = vpop.xlane.xlu0 %516
  %518 = vadd.xlane.f32.xlu0 %v455
  %v519 = vpop.xlane.xlu0 %518
  %520 = vadd.xlane.f32.xlu0 %v457
  %v521 = vpop.xlane.xlu0 %520
  %522 = vadd.xlane.f32.xlu0 %v459
  %v523 = vpop.xlane.xlu0 %522
  %524 = vadd.xlane.f32.xlu0 %v461
  %v525 = vpop.xlane.xlu0 %524
  %526 = vadd.xlane.f32.xlu0 %v463
  %v527 = vpop.xlane.xlu0 %526
  %528 = vadd.xlane.f32.xlu0 %v465
  %v529 = vpop.xlane.xlu0 %528
  %v530 = vlog2.pop %v467
  %v531 = vmul.f32 %v530, 0.6931472
  %v532 = vlog2.pop %v469
  %v533 = vmul.f32 %v532, 0.6931472
  %v534 = vlog2.pop %v471
  %v535 = vmul.f32 %v534, 0.6931472
  %v536 = vlog2.pop %v473
  %v537 = vmul.f32 %v536, 0.6931472
  %v538 = vlog2.pop %v475
  %v539 = vmul.f32 %v538, 0.6931472
  %v540 = vlog2.pop %v477
  %v541 = vmul.f32 %v540, 0.6931472
  %v542 = vlog2.pop %v479
  %v543 = vmul.f32 %v542, 0.6931472
  %v544 = vlog2.pop %v481
  %v545 = vmul.f32 %v544, 0.6931472
  %v546 = vlog2.pop %v483
  %v547 = vmul.f32 %v546, 0.6931472
  %v548 = vlog2.pop %v485
  %v549 = vmul.f32 %v548, 0.6931472
  %v550 = vlog2.pop %v487
  %v551 = vmul.f32 %v550, 0.6931472
  %v552 = vlog2.pop %v489
  %v553 = vmul.f32 %v552, 0.6931472
  %v554 = vlog2.pop %v491
  %v555 = vmul.f32 %v554, 0.6931472
  %v556 = vlog2.pop %v493
  %v557 = vmul.f32 %v556, 0.6931472
  %v558 = vlog2.pop %v495
  %v559 = vmul.f32 %v558, 0.6931472
  %v560 = vlog2.pop %v497
  %v561 = vmul.f32 %v560, 0.6931472
  %v562 = vlog2.pop %v499
  %v563 = vmul.f32 %v562, 0.6931472
  %v564 = vlog2.pop %v501
  %v565 = vmul.f32 %v564, 0.6931472
  %v566 = vlog2.pop %v503
  %v567 = vmul.f32 %v566, 0.6931472
  %v568 = vlog2.pop %v505
  %v569 = vmul.f32 %v568, 0.6931472
  %v570 = vlog2.pop %v507
  %v571 = vmul.f32 %v570, 0.6931472
  %v572 = vlog2.pop %v509
  %v573 = vmul.f32 %v572, 0.6931472
  %v574 = vlog2.pop %v511
  %v575 = vmul.f32 %v574, 0.6931472
  %v576 = vlog2.pop %v513
  %v577 = vmul.f32 %v576, 0.6931472
  %v578 = vlog2.pop %v515
  %v579 = vmul.f32 %v578, 0.6931472
  %v580 = vlog2.pop %v517
  %v581 = vmul.f32 %v580, 0.6931472
  %v582 = vlog2.pop %v519
  %v583 = vmul.f32 %v582, 0.6931472
  %v584 = vlog2.pop %v521
  %v585 = vmul.f32 %v584, 0.6931472
  %v586 = vlog2.pop %v523
  %v587 = vmul.f32 %v586, 0.6931472
  %v588 = vlog2.pop %v525
  %v589 = vmul.f32 %v588, 0.6931472
  %v590 = vlog2.pop %v527
  %v591 = vmul.f32 %v590, 0.6931472
  %v592 = vlog2.pop %v529
  %v593 = vmul.f32 %v592, 0.6931472
  %v594 = vadd.f32 %v307, %v531
  %v595 = vadd.f32 %v309, %v533
  %v596 = vadd.f32 %v311, %v535
  %v597 = vadd.f32 %v313, %v537
  %v598 = vadd.f32 %v315, %v539
  %v599 = vadd.f32 %v317, %v541
  %v600 = vadd.f32 %v319, %v543
  %v601 = vadd.f32 %v321, %v545
  %v602 = vadd.f32 %v323, %v547
  %v603 = vadd.f32 %v325, %v549
  %v604 = vadd.f32 %v327, %v551
  %v605 = vadd.f32 %v329, %v553
  %v606 = vadd.f32 %v331, %v555
  %v607 = vadd.f32 %v333, %v557
  %v608 = vadd.f32 %v335, %v559
  %v609 = vadd.f32 %v337, %v561
  %v610 = vadd.f32 %v339, %v563
  %v611 = vadd.f32 %v341, %v565
  %v612 = vadd.f32 %v343, %v567
  %v613 = vadd.f32 %v345, %v569
  %v614 = vadd.f32 %v347, %v571
  %v615 = vadd.f32 %v349, %v573
  %v616 = vadd.f32 %v351, %v575
  %v617 = vadd.f32 %v353, %v577
  %v618 = vadd.f32 %v355, %v579
  %v619 = vadd.f32 %v357, %v581
  %v620 = vadd.f32 %v359, %v583
  %v621 = vadd.f32 %v361, %v585
  %v622 = vadd.f32 %v363, %v587
  %v623 = vadd.f32 %v365, %v589
  %v624 = vadd.f32 %v367, %v591
  %v625 = vadd.f32 %v369, %v593
  %v626 = vsel %vm274, %v112, 0.0
  %v627 = vsel %vm275, %v113, 0.0
  %v628 = vsel %vm276, %v114, 0.0
  %v629 = vsel %vm277, %v115, 0.0
  %v630 = vsel %vm278, %v116, 0.0
  %v631 = vsel %vm279, %v117, 0.0
  %v632 = vsel %vm280, %v118, 0.0
  %v633 = vsel %vm281, %v119, 0.0
  %v634 = vsel %vm282, %v120, 0.0
  %v635 = vsel %vm283, %v121, 0.0
  %v636 = vsel %vm284, %v122, 0.0
  %v637 = vsel %vm285, %v123, 0.0
  %v638 = vsel %vm286, %v124, 0.0
  %v639 = vsel %vm287, %v125, 0.0
  %v640 = vsel %vm288, %v126, 0.0
  %v641 = vsel %vm289, %v127, 0.0
  %v642 = vsel %vm290, %v128, 0.0
  %v643 = vsel %vm291, %v129, 0.0
  %v644 = vsel %vm292, %v130, 0.0
  %v645 = vsel %vm293, %v131, 0.0
  %v646 = vsel %vm294, %v132, 0.0
  %v647 = vsel %vm295, %v133, 0.0
  %v648 = vsel %vm296, %v134, 0.0
  %v649 = vsel %vm297, %v135, 0.0
  %v650 = vsel %vm298, %v136, 0.0
  %v651 = vsel %vm299, %v137, 0.0
  %v652 = vsel %vm300, %v138, 0.0
  %v653 = vsel %vm301, %v139, 0.0
  %v654 = vsel %vm302, %v140, 0.0
  %v655 = vsel %vm303, %v141, 0.0
  %v656 = vsel %vm304, %v142, 0.0
  %v657 = vsel %vm305, %v143, 0.0
  %658 = vadd.xlane.f32.xlu0 %v626
  %v659 = vpop.xlane.xlu0 %658
  %660 = vadd.xlane.f32.xlu0 %v627
  %v661 = vpop.xlane.xlu0 %660
  %662 = vadd.xlane.f32.xlu0 %v628
  %v663 = vpop.xlane.xlu0 %662
  %664 = vadd.xlane.f32.xlu0 %v629
  %v665 = vpop.xlane.xlu0 %664
  %666 = vadd.xlane.f32.xlu0 %v630
  %v667 = vpop.xlane.xlu0 %666
  %668 = vadd.xlane.f32.xlu0 %v631
  %v669 = vpop.xlane.xlu0 %668
  %670 = vadd.xlane.f32.xlu0 %v632
  %v671 = vpop.xlane.xlu0 %670
  %672 = vadd.xlane.f32.xlu0 %v633
  %v673 = vpop.xlane.xlu0 %672
  %674 = vadd.xlane.f32.xlu0 %v634
  %v675 = vpop.xlane.xlu0 %674
  %676 = vadd.xlane.f32.xlu0 %v635
  %v677 = vpop.xlane.xlu0 %676
  %678 = vadd.xlane.f32.xlu0 %v636
  %v679 = vpop.xlane.xlu0 %678
  %680 = vadd.xlane.f32.xlu0 %v637
  %v681 = vpop.xlane.xlu0 %680
  %682 = vadd.xlane.f32.xlu0 %v638
  %v683 = vpop.xlane.xlu0 %682
  %684 = vadd.xlane.f32.xlu0 %v639
  %v685 = vpop.xlane.xlu0 %684
  %686 = vadd.xlane.f32.xlu0 %v640
  %v687 = vpop.xlane.xlu0 %686
  %688 = vadd.xlane.f32.xlu0 %v641
  %v689 = vpop.xlane.xlu0 %688
  %690 = vadd.xlane.f32.xlu0 %v642
  %v691 = vpop.xlane.xlu0 %690
  %692 = vadd.xlane.f32.xlu0 %v643
  %v693 = vpop.xlane.xlu0 %692
  %694 = vadd.xlane.f32.xlu0 %v644
  %v695 = vpop.xlane.xlu0 %694
  %696 = vadd.xlane.f32.xlu0 %v645
  %v697 = vpop.xlane.xlu0 %696
  %698 = vadd.xlane.f32.xlu0 %v646
  %v699 = vpop.xlane.xlu0 %698
  %700 = vadd.xlane.f32.xlu0 %v647
  %v701 = vpop.xlane.xlu0 %700
  %702 = vadd.xlane.f32.xlu0 %v648
  %v703 = vpop.xlane.xlu0 %702
  %704 = vadd.xlane.f32.xlu0 %v649
  %v705 = vpop.xlane.xlu0 %704
  %706 = vadd.xlane.f32.xlu0 %v650
  %v707 = vpop.xlane.xlu0 %706
  %708 = vadd.xlane.f32.xlu0 %v651
  %v709 = vpop.xlane.xlu0 %708
  %710 = vadd.xlane.f32.xlu0 %v652
  %v711 = vpop.xlane.xlu0 %710
  %712 = vadd.xlane.f32.xlu0 %v653
  %v713 = vpop.xlane.xlu0 %712
  %714 = vadd.xlane.f32.xlu0 %v654
  %v715 = vpop.xlane.xlu0 %714
  %716 = vadd.xlane.f32.xlu0 %v655
  %v717 = vpop.xlane.xlu0 %716
  %718 = vadd.xlane.f32.xlu0 %v656
  %v719 = vpop.xlane.xlu0 %718
  %720 = vadd.xlane.f32.xlu0 %v657
  %v721 = vpop.xlane.xlu0 %720
  %v722 = vsub.f32 %v594, %v659
  %v723 = vsub.f32 %v595, %v661
  %v724 = vsub.f32 %v596, %v663
  %v725 = vsub.f32 %v597, %v665
  %v726 = vsub.f32 %v598, %v667
  %v727 = vsub.f32 %v599, %v669
  %v728 = vsub.f32 %v600, %v671
  %v729 = vsub.f32 %v601, %v673
  %v730 = vsub.f32 %v602, %v675
  %v731 = vsub.f32 %v603, %v677
  %v732 = vsub.f32 %v604, %v679
  %v733 = vsub.f32 %v605, %v681
  %v734 = vsub.f32 %v606, %v683
  %v735 = vsub.f32 %v607, %v685
  %v736 = vsub.f32 %v608, %v687
  %v737 = vsub.f32 %v609, %v689
  %v738 = vsub.f32 %v610, %v691
  %v739 = vsub.f32 %v611, %v693
  %v740 = vsub.f32 %v612, %v695
  %v741 = vsub.f32 %v613, %v697
  %v742 = vsub.f32 %v614, %v699
  %v743 = vsub.f32 %v615, %v701
  %v744 = vsub.f32 %v616, %v703
  %v745 = vsub.f32 %v617, %v705
  %v746 = vsub.f32 %v618, %v707
  %v747 = vsub.f32 %v619, %v709
  %v748 = vsub.f32 %v620, %v711
  %v749 = vsub.f32 %v621, %v713
  %v750 = vsub.f32 %v622, %v715
  %v751 = vsub.f32 %v623, %v717
  %v752 = vsub.f32 %v624, %v719
  %v753 = vsub.f32 %v625, %v721
  %v754 = vsub.f32 0.0, %v722
  %v755 = vsub.f32 0.0, %v723
  %v756 = vsub.f32 0.0, %v724
  %v757 = vsub.f32 0.0, %v725
  %v758 = vsub.f32 0.0, %v726
  %v759 = vsub.f32 0.0, %v727
  %v760 = vsub.f32 0.0, %v728
  %v761 = vsub.f32 0.0, %v729
  %v762 = vsub.f32 0.0, %v730
  %v763 = vsub.f32 0.0, %v731
  %v764 = vsub.f32 0.0, %v732
  %v765 = vsub.f32 0.0, %v733
  %v766 = vsub.f32 0.0, %v734
  %v767 = vsub.f32 0.0, %v735
  %v768 = vsub.f32 0.0, %v736
  %v769 = vsub.f32 0.0, %v737
  %v770 = vsub.f32 0.0, %v738
  %v771 = vsub.f32 0.0, %v739
  %v772 = vsub.f32 0.0, %v740
  %v773 = vsub.f32 0.0, %v741
  %v774 = vsub.f32 0.0, %v742
  %v775 = vsub.f32 0.0, %v743
  %v776 = vsub.f32 0.0, %v744
  %v777 = vsub.f32 0.0, %v745
  %v778 = vsub.f32 0.0, %v746
  %v779 = vsub.f32 0.0, %v747
  %v780 = vsub.f32 0.0, %v748
  %v781 = vsub.f32 0.0, %v749
  %v782 = vsub.f32 0.0, %v750
  %v783 = vsub.f32 0.0, %v751
  %v784 = vsub.f32 0.0, %v752
  %v785 = vsub.f32 0.0, %v753
  %v786 = vmul.f32 %v754, 1.442695
  %v787 = vpow.pop %v786
  %v788 = vmul.f32 %v755, 1.442695
  %v789 = vpow.pop %v788
  %v790 = vmul.f32 %v756, 1.442695
  %v791 = vpow.pop %v790
  %v792 = vmul.f32 %v757, 1.442695
  %v793 = vpow.pop %v792
  %v794 = vmul.f32 %v758, 1.442695
  %v795 = vpow.pop %v794
  %v796 = vmul.f32 %v759, 1.442695
  %v797 = vpow.pop %v796
  %v798 = vmul.f32 %v760, 1.442695
  %v799 = vpow.pop %v798
  %v800 = vmul.f32 %v761, 1.442695
  %v801 = vpow.pop %v800
  %v802 = vmul.f32 %v762, 1.442695
  %v803 = vpow.pop %v802
  %v804 = vmul.f32 %v763, 1.442695
  %v805 = vpow.pop %v804
  %v806 = vmul.f32 %v764, 1.442695
  %v807 = vpow.pop %v806
  %v808 = vmul.f32 %v765, 1.442695
  %v809 = vpow.pop %v808
  %v810 = vmul.f32 %v766, 1.442695
  %v811 = vpow.pop %v810
  %v812 = vmul.f32 %v767, 1.442695
  %v813 = vpow.pop %v812
  %v814 = vmul.f32 %v768, 1.442695
  %v815 = vpow.pop %v814
  %v816 = vmul.f32 %v769, 1.442695
  %v817 = vpow.pop %v816
  %v818 = vmul.f32 %v770, 1.442695
  %v819 = vpow.pop %v818
  %v820 = vmul.f32 %v771, 1.442695
  %v821 = vpow.pop %v820
  %v822 = vmul.f32 %v772, 1.442695
  %v823 = vpow.pop %v822
  %v824 = vmul.f32 %v773, 1.442695
  %v825 = vpow.pop %v824
  %v826 = vmul.f32 %v774, 1.442695
  %v827 = vpow.pop %v826
  %v828 = vmul.f32 %v775, 1.442695
  %v829 = vpow.pop %v828
  %v830 = vmul.f32 %v776, 1.442695
  %v831 = vpow.pop %v830
  %v832 = vmul.f32 %v777, 1.442695
  %v833 = vpow.pop %v832
  %v834 = vmul.f32 %v778, 1.442695
  %v835 = vpow.pop %v834
  %v836 = vmul.f32 %v779, 1.442695
  %v837 = vpow.pop %v836
  %v838 = vmul.f32 %v780, 1.442695
  %v839 = vpow.pop %v838
  %v840 = vmul.f32 %v781, 1.442695
  %v841 = vpow.pop %v840
  %v842 = vmul.f32 %v782, 1.442695
  %v843 = vpow.pop %v842
  %v844 = vmul.f32 %v783, 1.442695
  %v845 = vpow.pop %v844
  %v846 = vmul.f32 %v784, 1.442695
  %v847 = vpow.pop %v846
  %v848 = vmul.f32 %v785, 1.442695
  %v849 = vpow.pop %v848
  %v850 = vsub.f32 1.0, %v787
  %v851 = vsub.f32 1.0, %v789
  %v852 = vsub.f32 1.0, %v791
  %v853 = vsub.f32 1.0, %v793
  %v854 = vsub.f32 1.0, %v795
  %v855 = vsub.f32 1.0, %v797
  %v856 = vsub.f32 1.0, %v799
  %v857 = vsub.f32 1.0, %v801
  %v858 = vsub.f32 1.0, %v803
  %v859 = vsub.f32 1.0, %v805
  %v860 = vsub.f32 1.0, %v807
  %v861 = vsub.f32 1.0, %v809
  %v862 = vsub.f32 1.0, %v811
  %v863 = vsub.f32 1.0, %v813
  %v864 = vsub.f32 1.0, %v815
  %v865 = vsub.f32 1.0, %v817
  %v866 = vsub.f32 1.0, %v819
  %v867 = vsub.f32 1.0, %v821
  %v868 = vsub.f32 1.0, %v823
  %v869 = vsub.f32 1.0, %v825
  %v870 = vsub.f32 1.0, %v827
  %v871 = vsub.f32 1.0, %v829
  %v872 = vsub.f32 1.0, %v831
  %v873 = vsub.f32 1.0, %v833
  %v874 = vsub.f32 1.0, %v835
  %v875 = vsub.f32 1.0, %v837
  %v876 = vsub.f32 1.0, %v839
  %v877 = vsub.f32 1.0, %v841
  %v878 = vsub.f32 1.0, %v843
  %v879 = vsub.f32 1.0, %v845
  %v880 = vsub.f32 1.0, %v847
  %v881 = vsub.f32 1.0, %v849
  %v882 = vmax.f32 %v850, 0.0
  %v883 = vmax.f32 %v851, 0.0
  %v884 = vmax.f32 %v852, 0.0
  %v885 = vmax.f32 %v853, 0.0
  %v886 = vmax.f32 %v854, 0.0
  %v887 = vmax.f32 %v855, 0.0
  %v888 = vmax.f32 %v856, 0.0
  %v889 = vmax.f32 %v857, 0.0
  %v890 = vmax.f32 %v858, 0.0
  %v891 = vmax.f32 %v859, 0.0
  %v892 = vmax.f32 %v860, 0.0
  %v893 = vmax.f32 %v861, 0.0
  %v894 = vmax.f32 %v862, 0.0
  %v895 = vmax.f32 %v863, 0.0
  %v896 = vmax.f32 %v864, 0.0
  %v897 = vmax.f32 %v865, 0.0
  %v898 = vmax.f32 %v866, 0.0
  %v899 = vmax.f32 %v867, 0.0
  %v900 = vmax.f32 %v868, 0.0
  %v901 = vmax.f32 %v869, 0.0
  %v902 = vmax.f32 %v870, 0.0
  %v903 = vmax.f32 %v871, 0.0
  %v904 = vmax.f32 %v872, 0.0
  %v905 = vmax.f32 %v873, 0.0
  %v906 = vmax.f32 %v874, 0.0
  %v907 = vmax.f32 %v875, 0.0
  %v908 = vmax.f32 %v876, 0.0
  %v909 = vmax.f32 %v877, 0.0
  %v910 = vmax.f32 %v878, 0.0
  %v911 = vmax.f32 %v879, 0.0
  %v912 = vmax.f32 %v880, 0.0
  %v913 = vmax.f32 %v881, 0.0
  %v914 = vmul.f32 %v882, %v882
  %v915 = vmul.f32 %v883, %v883
  %v916 = vmul.f32 %v884, %v884
  %v917 = vmul.f32 %v885, %v885
  %v918 = vmul.f32 %v886, %v886
  %v919 = vmul.f32 %v887, %v887
  %v920 = vmul.f32 %v888, %v888
  %v921 = vmul.f32 %v889, %v889
  %v922 = vmul.f32 %v890, %v890
  %v923 = vmul.f32 %v891, %v891
  %v924 = vmul.f32 %v892, %v892
  %v925 = vmul.f32 %v893, %v893
  %v926 = vmul.f32 %v894, %v894
  %v927 = vmul.f32 %v895, %v895
  %v928 = vmul.f32 %v896, %v896
  %v929 = vmul.f32 %v897, %v897
  %v930 = vmul.f32 %v898, %v898
  %v931 = vmul.f32 %v899, %v899
  %v932 = vmul.f32 %v900, %v900
  %v933 = vmul.f32 %v901, %v901
  %v934 = vmul.f32 %v902, %v902
  %v935 = vmul.f32 %v903, %v903
  %v936 = vmul.f32 %v904, %v904
  %v937 = vmul.f32 %v905, %v905
  %v938 = vmul.f32 %v906, %v906
  %v939 = vmul.f32 %v907, %v907
  %v940 = vmul.f32 %v908, %v908
  %v941 = vmul.f32 %v909, %v909
  %v942 = vmul.f32 %v910, %v910
  %v943 = vmul.f32 %v911, %v911
  %v944 = vmul.f32 %v912, %v912
  %v945 = vmul.f32 %v913, %v913
  %v946 = vmul.f32 %v914, %v722
  %v947 = vmul.f32 %v915, %v723
  %v948 = vmul.f32 %v916, %v724
  %v949 = vmul.f32 %v917, %v725
  %v950 = vmul.f32 %v918, %v726
  %v951 = vmul.f32 %v919, %v727
  %v952 = vmul.f32 %v920, %v728
  %v953 = vmul.f32 %v921, %v729
  %v954 = vmul.f32 %v922, %v730
  %v955 = vmul.f32 %v923, %v731
  %v956 = vmul.f32 %v924, %v732
  %v957 = vmul.f32 %v925, %v733
  %v958 = vmul.f32 %v926, %v734
  %v959 = vmul.f32 %v927, %v735
  %v960 = vmul.f32 %v928, %v736
  %v961 = vmul.f32 %v929, %v737
  %v962 = vmul.f32 %v930, %v738
  %v963 = vmul.f32 %v931, %v739
  %v964 = vmul.f32 %v932, %v740
  %v965 = vmul.f32 %v933, %v741
  %v966 = vmul.f32 %v934, %v742
  %v967 = vmul.f32 %v935, %v743
  %v968 = vmul.f32 %v936, %v744
  %v969 = vmul.f32 %v937, %v745
  %v970 = vmul.f32 %v938, %v746
  %v971 = vmul.f32 %v939, %v747
  %v972 = vmul.f32 %v940, %v748
  %v973 = vmul.f32 %v941, %v749
  %v974 = vmul.f32 %v942, %v750
  %v975 = vmul.f32 %v943, %v751
  %v976 = vmul.f32 %v944, %v752
  %v977 = vmul.f32 %v945, %v753
  %s978 = sadd.s32 0, 0
  %s979 = smul.u32 %s978, 256
  %v980 = vlaneseq
  %v981 = vshrl.u32 %v980, 7
  %v982 = vadd.s32 %v981, 8
  %v983 = vadd.s32 %v981, 16
  %v984 = vadd.s32 %v981, 24
  %v985 = vadd.s32 %v981, 32
  %v986 = vadd.s32 %v981, 40
  %v987 = vadd.s32 %v981, 48
  %v988 = vadd.s32 %v981, 56
  %v989 = vadd.s32 %v981, 64
  %v990 = vadd.s32 %v981, 72
  %v991 = vadd.s32 %v981, 80
  %v992 = vadd.s32 %v981, 88
  %v993 = vadd.s32 %v981, 96
  %v994 = vadd.s32 %v981, 104
  %v995 = vadd.s32 %v981, 112
  %v996 = vadd.s32 %v981, 120
  %v997 = vadd.s32 %v981, 128
  %v998 = vadd.s32 %v981, 136
  %v999 = vadd.s32 %v981, 144
  %v1000 = vadd.s32 %v981, 152
  %v1001 = vadd.s32 %v981, 160
  %v1002 = vadd.s32 %v981, 168
  %v1003 = vadd.s32 %v981, 176
  %v1004 = vadd.s32 %v981, 184
  %v1005 = vadd.s32 %v981, 192
  %v1006 = vadd.s32 %v981, 200
  %v1007 = vadd.s32 %v981, 208
  %v1008 = vadd.s32 %v981, 216
  %v1009 = vadd.s32 %v981, 224
  %v1010 = vadd.s32 %v981, 232
  %v1011 = vadd.s32 %v981, 240
  %v1012 = vadd.s32 %v981, 248
  %v1013 = vstv %s979
  %v1014 = vadd.s32 %v1013, %v981
  %v1015 = vadd.s32 %v1013, %v982
  %v1016 = vadd.s32 %v1013, %v983
  %v1017 = vadd.s32 %v1013, %v984
  %v1018 = vadd.s32 %v1013, %v985
  %v1019 = vadd.s32 %v1013, %v986
  %v1020 = vadd.s32 %v1013, %v987
  %v1021 = vadd.s32 %v1013, %v988
  %v1022 = vadd.s32 %v1013, %v989
  %v1023 = vadd.s32 %v1013, %v990
  %v1024 = vadd.s32 %v1013, %v991
  %v1025 = vadd.s32 %v1013, %v992
  %v1026 = vadd.s32 %v1013, %v993
  %v1027 = vadd.s32 %v1013, %v994
  %v1028 = vadd.s32 %v1013, %v995
  %v1029 = vadd.s32 %v1013, %v996
  %v1030 = vadd.s32 %v1013, %v997
  %v1031 = vadd.s32 %v1013, %v998
  %v1032 = vadd.s32 %v1013, %v999
  %v1033 = vadd.s32 %v1013, %v1000
  %v1034 = vadd.s32 %v1013, %v1001
  %v1035 = vadd.s32 %v1013, %v1002
  %v1036 = vadd.s32 %v1013, %v1003
  %v1037 = vadd.s32 %v1013, %v1004
  %v1038 = vadd.s32 %v1013, %v1005
  %v1039 = vadd.s32 %v1013, %v1006
  %v1040 = vadd.s32 %v1013, %v1007
  %v1041 = vadd.s32 %v1013, %v1008
  %v1042 = vadd.s32 %v1013, %v1009
  %v1043 = vadd.s32 %v1013, %v1010
  %v1044 = vadd.s32 %v1013, %v1011
  %v1045 = vadd.s32 %v1013, %v1012
  %vm1046 = vcmp.lt.s32.totalorder %v1014, 256
  %vm1047 = vcmp.lt.s32.totalorder %v1015, 256
  %vm1048 = vcmp.lt.s32.totalorder %v1016, 256
  %vm1049 = vcmp.lt.s32.totalorder %v1017, 256
  %vm1050 = vcmp.lt.s32.totalorder %v1018, 256
  %vm1051 = vcmp.lt.s32.totalorder %v1019, 256
  %vm1052 = vcmp.lt.s32.totalorder %v1020, 256
  %vm1053 = vcmp.lt.s32.totalorder %v1021, 256
  %vm1054 = vcmp.lt.s32.totalorder %v1022, 256
  %vm1055 = vcmp.lt.s32.totalorder %v1023, 256
  %vm1056 = vcmp.lt.s32.totalorder %v1024, 256
  %vm1057 = vcmp.lt.s32.totalorder %v1025, 256
  %vm1058 = vcmp.lt.s32.totalorder %v1026, 256
  %vm1059 = vcmp.lt.s32.totalorder %v1027, 256
  %vm1060 = vcmp.lt.s32.totalorder %v1028, 256
  %vm1061 = vcmp.lt.s32.totalorder %v1029, 256
  %vm1062 = vcmp.lt.s32.totalorder %v1030, 256
  %vm1063 = vcmp.lt.s32.totalorder %v1031, 256
  %vm1064 = vcmp.lt.s32.totalorder %v1032, 256
  %vm1065 = vcmp.lt.s32.totalorder %v1033, 256
  %vm1066 = vcmp.lt.s32.totalorder %v1034, 256
  %vm1067 = vcmp.lt.s32.totalorder %v1035, 256
  %vm1068 = vcmp.lt.s32.totalorder %v1036, 256
  %vm1069 = vcmp.lt.s32.totalorder %v1037, 256
  %vm1070 = vcmp.lt.s32.totalorder %v1038, 256
  %vm1071 = vcmp.lt.s32.totalorder %v1039, 256
  %vm1072 = vcmp.lt.s32.totalorder %v1040, 256
  %vm1073 = vcmp.lt.s32.totalorder %v1041, 256
  %vm1074 = vcmp.lt.s32.totalorder %v1042, 256
  %vm1075 = vcmp.lt.s32.totalorder %v1043, 256
  %vm1076 = vcmp.lt.s32.totalorder %v1044, 256
  %vm1077 = vcmp.lt.s32.totalorder %v1045, 256
  %v1078 = vld [vmem:[%s2] sm:$0xff]
  %v1079 = vld [vmem:[%s2 + $0x8] sm:$0xff]
  %v1080 = vld [vmem:[%s2 + $0x10] sm:$0xff]
  %v1081 = vld [vmem:[%s2 + $0x18] sm:$0xff]
  %v1082 = vld [vmem:[%s2 + $0x20] sm:$0xff]
  %v1083 = vld [vmem:[%s2 + $0x28] sm:$0xff]
  %v1084 = vld [vmem:[%s2 + $0x30] sm:$0xff]
  %v1085 = vld [vmem:[%s2 + $0x38] sm:$0xff]
  %v1086 = vld [vmem:[%s2 + $0x40] sm:$0xff]
  %v1087 = vld [vmem:[%s2 + $0x48] sm:$0xff]
  %v1088 = vld [vmem:[%s2 + $0x50] sm:$0xff]
  %v1089 = vld [vmem:[%s2 + $0x58] sm:$0xff]
  %v1090 = vld [vmem:[%s2 + $0x60] sm:$0xff]
  %v1091 = vld [vmem:[%s2 + $0x68] sm:$0xff]
  %v1092 = vld [vmem:[%s2 + $0x70] sm:$0xff]
  %v1093 = vld [vmem:[%s2 + $0x78] sm:$0xff]
  %v1094 = vld [vmem:[%s2 + $0x80] sm:$0xff]
  %v1095 = vld [vmem:[%s2 + $0x88] sm:$0xff]
  %v1096 = vld [vmem:[%s2 + $0x90] sm:$0xff]
  %v1097 = vld [vmem:[%s2 + $0x98] sm:$0xff]
  %v1098 = vld [vmem:[%s2 + $0xa0] sm:$0xff]
  %v1099 = vld [vmem:[%s2 + $0xa8] sm:$0xff]
  %v1100 = vld [vmem:[%s2 + $0xb0] sm:$0xff]
  %v1101 = vld [vmem:[%s2 + $0xb8] sm:$0xff]
  %v1102 = vld [vmem:[%s2 + $0xc0] sm:$0xff]
  %v1103 = vld [vmem:[%s2 + $0xc8] sm:$0xff]
  %v1104 = vld [vmem:[%s2 + $0xd0] sm:$0xff]
  %v1105 = vld [vmem:[%s2 + $0xd8] sm:$0xff]
  %v1106 = vld [vmem:[%s2 + $0xe0] sm:$0xff]
  %v1107 = vld [vmem:[%s2 + $0xe8] sm:$0xff]
  %v1108 = vld [vmem:[%s2 + $0xf0] sm:$0xff]
  %v1109 = vld [vmem:[%s2 + $0xf8] sm:$0xff]
  %v1110 = vsel %vm1046, %v946, 0.0
  %v1111 = vsel %vm1047, %v947, 0.0
  %v1112 = vsel %vm1048, %v948, 0.0
  %v1113 = vsel %vm1049, %v949, 0.0
  %v1114 = vsel %vm1050, %v950, 0.0
  %v1115 = vsel %vm1051, %v951, 0.0
  %v1116 = vsel %vm1052, %v952, 0.0
  %v1117 = vsel %vm1053, %v953, 0.0
  %v1118 = vsel %vm1054, %v954, 0.0
  %v1119 = vsel %vm1055, %v955, 0.0
  %v1120 = vsel %vm1056, %v956, 0.0
  %v1121 = vsel %vm1057, %v957, 0.0
  %v1122 = vsel %vm1058, %v958, 0.0
  %v1123 = vsel %vm1059, %v959, 0.0
  %v1124 = vsel %vm1060, %v960, 0.0
  %v1125 = vsel %vm1061, %v961, 0.0
  %v1126 = vsel %vm1062, %v962, 0.0
  %v1127 = vsel %vm1063, %v963, 0.0
  %v1128 = vsel %vm1064, %v964, 0.0
  %v1129 = vsel %vm1065, %v965, 0.0
  %v1130 = vsel %vm1066, %v966, 0.0
  %v1131 = vsel %vm1067, %v967, 0.0
  %v1132 = vsel %vm1068, %v968, 0.0
  %v1133 = vsel %vm1069, %v969, 0.0
  %v1134 = vsel %vm1070, %v970, 0.0
  %v1135 = vsel %vm1071, %v971, 0.0
  %v1136 = vsel %vm1072, %v972, 0.0
  %v1137 = vsel %vm1073, %v973, 0.0
  %v1138 = vsel %vm1074, %v974, 0.0
  %v1139 = vsel %vm1075, %v975, 0.0
  %v1140 = vsel %vm1076, %v976, 0.0
  %v1141 = vsel %vm1077, %v977, 0.0
  %v1142 = vadd.f32 %v1078, %v1110
  %v1143 = vadd.f32 %v1079, %v1111
  %v1144 = vadd.f32 %v1080, %v1112
  %v1145 = vadd.f32 %v1081, %v1113
  %v1146 = vadd.f32 %v1082, %v1114
  %v1147 = vadd.f32 %v1083, %v1115
  %v1148 = vadd.f32 %v1084, %v1116
  %v1149 = vadd.f32 %v1085, %v1117
  %v1150 = vadd.f32 %v1086, %v1118
  %v1151 = vadd.f32 %v1087, %v1119
  %v1152 = vadd.f32 %v1088, %v1120
  %v1153 = vadd.f32 %v1089, %v1121
  %v1154 = vadd.f32 %v1090, %v1122
  %v1155 = vadd.f32 %v1091, %v1123
  %v1156 = vadd.f32 %v1092, %v1124
  %v1157 = vadd.f32 %v1093, %v1125
  %v1158 = vadd.f32 %v1094, %v1126
  %v1159 = vadd.f32 %v1095, %v1127
  %v1160 = vadd.f32 %v1096, %v1128
  %v1161 = vadd.f32 %v1097, %v1129
  %v1162 = vadd.f32 %v1098, %v1130
  %v1163 = vadd.f32 %v1099, %v1131
  %v1164 = vadd.f32 %v1100, %v1132
  %v1165 = vadd.f32 %v1101, %v1133
  %v1166 = vadd.f32 %v1102, %v1134
  %v1167 = vadd.f32 %v1103, %v1135
  %v1168 = vadd.f32 %v1104, %v1136
  %v1169 = vadd.f32 %v1105, %v1137
  %v1170 = vadd.f32 %v1106, %v1138
  %v1171 = vadd.f32 %v1107, %v1139
  %v1172 = vadd.f32 %v1108, %v1140
  %v1173 = vadd.f32 %v1109, %v1141
  %vm1174 = vcmask 7168
  %1175 = vst.msk [vmem:[%s2] sm:$0xff] %vm1174, %v1142
  %1176 = vst.msk [vmem:[%s2 + $0x8] sm:$0xff] %vm1174, %v1143
  %1177 = vst.msk [vmem:[%s2 + $0x10] sm:$0xff] %vm1174, %v1144
  %1178 = vst.msk [vmem:[%s2 + $0x18] sm:$0xff] %vm1174, %v1145
  %1179 = vst.msk [vmem:[%s2 + $0x20] sm:$0xff] %vm1174, %v1146
  %1180 = vst.msk [vmem:[%s2 + $0x28] sm:$0xff] %vm1174, %v1147
  %1181 = vst.msk [vmem:[%s2 + $0x30] sm:$0xff] %vm1174, %v1148
  %1182 = vst.msk [vmem:[%s2 + $0x38] sm:$0xff] %vm1174, %v1149
  %1183 = vst.msk [vmem:[%s2 + $0x40] sm:$0xff] %vm1174, %v1150
  %1184 = vst.msk [vmem:[%s2 + $0x48] sm:$0xff] %vm1174, %v1151
  %1185 = vst.msk [vmem:[%s2 + $0x50] sm:$0xff] %vm1174, %v1152
  %1186 = vst.msk [vmem:[%s2 + $0x58] sm:$0xff] %vm1174, %v1153
  %1187 = vst.msk [vmem:[%s2 + $0x60] sm:$0xff] %vm1174, %v1154
  %1188 = vst.msk [vmem:[%s2 + $0x68] sm:$0xff] %vm1174, %v1155
  %1189 = vst.msk [vmem:[%s2 + $0x70] sm:$0xff] %vm1174, %v1156
  %1190 = vst.msk [vmem:[%s2 + $0x78] sm:$0xff] %vm1174, %v1157
  %1191 = vst.msk [vmem:[%s2 + $0x80] sm:$0xff] %vm1174, %v1158
  %1192 = vst.msk [vmem:[%s2 + $0x88] sm:$0xff] %vm1174, %v1159
  %1193 = vst.msk [vmem:[%s2 + $0x90] sm:$0xff] %vm1174, %v1160
  %1194 = vst.msk [vmem:[%s2 + $0x98] sm:$0xff] %vm1174, %v1161
  %1195 = vst.msk [vmem:[%s2 + $0xa0] sm:$0xff] %vm1174, %v1162
  %1196 = vst.msk [vmem:[%s2 + $0xa8] sm:$0xff] %vm1174, %v1163
  %1197 = vst.msk [vmem:[%s2 + $0xb0] sm:$0xff] %vm1174, %v1164
  %1198 = vst.msk [vmem:[%s2 + $0xb8] sm:$0xff] %vm1174, %v1165
  %1199 = vst.msk [vmem:[%s2 + $0xc0] sm:$0xff] %vm1174, %v1166
  %1200 = vst.msk [vmem:[%s2 + $0xc8] sm:$0xff] %vm1174, %v1167
  %1201 = vst.msk [vmem:[%s2 + $0xd0] sm:$0xff] %vm1174, %v1168
  %1202 = vst.msk [vmem:[%s2 + $0xd8] sm:$0xff] %vm1174, %v1169
  %1203 = vst.msk [vmem:[%s2 + $0xe0] sm:$0xff] %vm1174, %v1170
  %1204 = vst.msk [vmem:[%s2 + $0xe8] sm:$0xff] %vm1174, %v1171
  %1205 = vst.msk [vmem:[%s2 + $0xf0] sm:$0xff] %vm1174, %v1172
  %1206 = vst.msk [vmem:[%s2 + $0xf8] sm:$0xff] %vm1174, %v1173
  // Predicated region
  $region14: #{tpu_custom_call.1} parent=0 // pred_check
    _
  $region15: #{tpu_custom_call.1} parent=0 // pred_check_branch
    %1208 = sbr.rel (0) target = $region17
  $region16: #{tpu_custom_call.1} parent=0 // pred_region
    _
  $region17: #{tpu_custom_call.1} parent=0 // pred_fallthru
    _
  // Predicated region
  $region18: #{tpu_custom_call.1} parent=0 // pred_check
    _
  $region19: #{tpu_custom_call.1} parent=0 // pred_check_branch
    %1210 = sbr.rel (0) target = $region21
  $region20: #{tpu_custom_call.1} parent=0 // pred_region
    _
  $region21: #{tpu_custom_call.1} parent=0 // pred_fallthru
    _

</llo_original>
